<compile_context>
chip_gen: v6e
topology: v6e:2x2x1
jax: 0.10.0
libtpu: 0.0.40
codegen_flags: <defaults>
</compile_context>

<pallas_src>
import functools

import jax
import jax.numpy as jnp
from jax.experimental import pallas as pl
from jax.experimental.pallas import tpu as pltpu

_LRELU_SLOPE = 0.2
_BN_EPS = 1e-5


def _largest_divisor(n, cap, multiple_of=1):
    """Largest d <= cap with d | n and multiple_of | d; falls back to n itself."""
    best = 0
    for d in range(1, min(n, cap) + 1):
        if n % d == 0 and d % multiple_of == 0:
            best = d
    return best if best > 0 else n


@functools.lru_cache(maxsize=None)
def _vmem_limit():
    """Chip-conditional scoped-VMEM budget (v5e/v6e: up to 96 MiB, v7x: ~48 MiB)."""
    try:
        cap = int(pltpu.get_tpu_info().vmem_capacity_bytes)
        return max(32 * 1024 * 1024, min((cap * 3) // 4, 96 * 1024 * 1024))
    except Exception:
        return 32 * 1024 * 1024


# --------------------------- Conv3d (k=3, p=1) kernel ---------------------------

def _make_conv3d_kernel(*, st, sh, sw, T, H, W, Cin, Cout, Ho, Wo, mode, has_affine):
    """Conv3d(k=3, pad=1, stride=(st, sh, sw)) for one (n, t_out) grid step.

    The 3 input T-slices are DMA'd into a double-buffered VMEM scratch, optionally run
    through the previous layer's fused BatchNorm affine + LeakyReLU, packed along the
    channel axis of a zero-haloed window xpad (H+2, W+2, 3*Cin), and the 27 conv taps
    become 9 MXU matmuls with K = 3*Cin.  The halo stays exactly zero, matching
    PyTorch's pad-after-activation ordering.
    """
    C3 = 3 * Cin

    def kernel(*refs):
        i = 0
        x_hbm = refs[i]; i += 1
        w_ref = refs[i]; i += 1
        b_ref = refs[i]; i += 1
        ab_ref = None
        if has_affine:
            ab_ref = refs[i]; i += 1
        y_ref = refs[i]; i += 1
        stats_ref = None
        if mode == "bn":
            stats_ref = refs[i]; i += 1
        xbuf, sem, xpad = refs[i], refs[i + 1], refs[i + 2]

        n = pl.program_id(0)
        to = pl.program_id(1)
        n_to = pl.num_programs(1)
        slot = to % 2

        def t_src(to_i, kt):
            # clamped source T index; out-of-bounds slices are zeroed after the wait
            return jnp.clip(to_i * st - 1 + kt, 0, T - 1)

        def issue(to_i, slot_i):
            for kt in range(3):
                pltpu.make_async_copy(
                    x_hbm.at[n, t_src(to_i, kt)],
                    xbuf.at[slot_i, kt],
                    sem.at[slot_i, kt],
                ).start()

        # Prime at the start of every t_out row (correct under megacore sharding of N).
        @pl.when(to == 0)
        def _():
            issue(to, slot)

        # Prefetch the next t_out step of this batch row (overlaps DMA with compute).
        @pl.when(to + 1 < n_to)
        def _():
            issue(to + 1, 1 - slot)

        for kt in range(3):
            pltpu.make_async_copy(
                x_hbm.at[n, t_src(to, kt)],
                xbuf.at[slot, kt],
                sem.at[slot, kt],
            ).wait()

        # ---- zero halo border of the padded window (kept zero every step) ----
        zrow = jnp.zeros((1, W + 2, C3), jnp.bfloat16)
        zcol = jnp.zeros((H + 2, 1, C3), jnp.bfloat16)
        xpad[0:1, :, :] = zrow
        xpad[H + 1:H + 2, :, :] = zrow
        xpad[:, 0:1, :] = zcol
        xpad[:, W + 1:W + 2, :] = zcol

        if has_affine:
            ab = ab_ref[...]                                  # (1, 2, Cin) f32
            scale = ab[:, 0, :].reshape(1, 1, Cin)
            shift = ab[:, 1, :].reshape(1, 1, Cin)

        # ---- fused BN-affine + LeakyReLU prologue, T-boundary mask, channel pack ----
        blks = []
        for kt in range(3):
            blk = xbuf[slot, kt].astype(jnp.float32)          # (H, W, Cin)
            if has_affine:
                blk = blk * scale + shift
                blk = jnp.where(blk > 0, blk, _LRELU_SLOPE * blk)
            t_raw = to * st - 1 + kt
            ok = jnp.where((t_raw >= 0) & (t_raw < T),
                           jnp.float32(1.0), jnp.float32(0.0))
            blks.append((blk * ok).astype(jnp.bfloat16))
        xpad[1:H + 1, 1:W + 1, :] = jnp.concatenate(blks, axis=-1)

        xw = xpad[...]                                        # (H+2, W+2, 3*Cin)

        # Static stride-phase decomposition (only on stride-2 axes; stride-1 is free).
        if sh == 2:
            xh = xw.reshape(Ho + 1, 2, W + 2, C3)
            hps = [xh[:, 0], xh[:, 1]]
        else:
            hps = [xw]
        phases = []
        for hp in hps:
            if sw == 2:
                xv = hp.reshape(hp.shape[0], Wo + 1, 2, C3)
                phases.append([xv[:, :, 0], xv[:, :, 1]])
            else:
                phases.append([hp])

        # ---- 9 MXU matmuls with K = 3*Cin (kt folded into the contraction) ----
        acc = None
        for ky in range(3):
            hpi, hr = (ky % 2, ky // 2) if sh == 2 else (0, ky)
            for kx in range(3):
                wpi, wc = (kx % 2, kx // 2) if sw == 2 else (0, kx)
                a = phases[hpi][wpi][hr:hr + Ho, wc:wc + Wo, :]
                a = a.reshape(Ho * Wo, C3)
                d = jnp.dot(a, w_ref[3 * ky + kx],
                            preferred_element_type=jnp.float32)
                acc = d if acc is None else acc + d

        # ---- fused epilogues ----
        if mode == "plain":                                   # bias + LeakyReLU
            out = acc + b_ref[...]
            out = jnp.where(out > 0, out, _LRELU_SLOPE * out)
            y_ref[...] = out.reshape(1, 1, Ho, Wo, Cout).astype(y_ref.dtype)
        elif mode == "bn":                                    # raw conv + BN partials
            y_ref[...] = acc.reshape(1, 1, Ho, Wo, Cout).astype(y_ref.dtype)
            s1 = jnp.sum(acc, axis=0, keepdims=True)
            s2 = jnp.sum(acc * acc, axis=0, keepdims=True)
            stats_ref[...] = jnp.concatenate([s1, s2], axis=0).reshape(1, 1, 2, Cout)
        else:                                                 # final logits (f32)
            out = acc + b_ref[...]
            y_ref[...] = out.reshape(1, 1, Ho, Wo, Cout).astype(y_ref.dtype)

    return kernel


def _conv3d_layer(x_cl, layer, mode, num_groups, ab=None):
    """One Conv3d(k=3, stride=layer['stride'], pad=1) layer, channels-last bf16."""
    x = x_cl.astype(jnp.bfloat16)
    N, T, H, W, Cin = x.shape
    st, sh, sw = layer["stride"]
    Cout = layer["wmat"].shape[2]
    assert layer["wmat"].shape[1] == 3 * Cin
    if sh == 2:
        assert H % 2 == 0, "stride-2 layers require even H"
    if sw == 2:
        assert W % 2 == 0, "stride-2 layers require even W"
    To = (T - 1) // st + 1
    Ho = (H - 1) // sh + 1
    Wo = (W - 1) // sw + 1
    has_affine = ab is not None

    kernel = _make_conv3d_kernel(st=st, sh=sh, sw=sw, T=T, H=H, W=W, Cin=Cin,
                                 Cout=Cout, Ho=Ho, Wo=Wo, mode=mode,
                                 has_affine=has_affine)

    in_specs = [
        pl.BlockSpec(memory_space=pl.ANY),                        # raw HBM, manual DMA
        pl.BlockSpec((9, 3 * Cin, Cout), lambda n, t: (0, 0, 0)),  # weights resident
        pl.BlockSpec((1, Cout), lambda n, t: (0, 0)),             # bias resident
    ]
    args = [x, layer["wmat"], layer["bias2d"]]
    if has_affine:
        npg = N // num_groups
        assert ab.shape == (num_groups, 2, Cin)
        in_specs.append(pl.BlockSpec((1, 2, Cin), lambda n, t: (n // npg, 0, 0)))
        args.append(ab.astype(jnp.float32))

    if mode == "final":
        out_shape = jax.ShapeDtypeStruct((N, To, Ho, Wo, Cout), jnp.float32)
        out_specs = pl.BlockSpec((1, 1, Ho, Wo, Cout), lambda n, t: (n, t, 0, 0, 0))
    elif mode == "bn":
        out_shape = (jax.ShapeDtypeStruct((N, To, Ho, Wo, Cout), jnp.bfloat16),
                     jax.ShapeDtypeStruct((N, To, 2, Cout), jnp.float32))
        out_specs = (pl.BlockSpec((1, 1, Ho, Wo, Cout), lambda n, t: (n, t, 0, 0, 0)),
                     pl.BlockSpec((1, 1, 2, Cout), lambda n, t: (n, t, 0, 0)))
    else:
        out_shape = jax.ShapeDtypeStruct((N, To, Ho, Wo, Cout), jnp.bfloat16)
        out_specs = pl.BlockSpec((1, 1, Ho, Wo, Cout), lambda n, t: (n, t, 0, 0, 0))

    flops = int(2 * N * To * Ho * Wo * 27 * Cin * Cout)
    bytes_accessed = int(3 * N * To * H * W * Cin * 2
                         + 27 * Cin * Cout * 2
                         + N * To * Ho * Wo * Cout * 2)

    return pl.pallas_call(
        kernel,
        out_shape=out_shape,
        grid_spec=pltpu.PrefetchScalarGridSpec(
            num_scalar_prefetch=0,
            grid=(N, To),
            in_specs=in_specs,
            out_specs=out_specs,
            scratch_shapes=[
                pltpu.VMEM((2, 3, H, W, Cin), jnp.bfloat16),     # double-buffered slices
                pltpu.SemaphoreType.DMA((2, 3)),
                pltpu.VMEM((H + 2, W + 2, 3 * Cin), jnp.bfloat16),  # zero-haloed window
            ]),
        compiler_params=pltpu.CompilerParams(
            dimension_semantics=("parallel", "arbitrary"),
            vmem_limit_bytes=_vmem_limit()),
        cost_estimate=pl.CostEstimate(flops=flops, transcendentals=0,
                                      bytes_accessed=bytes_accessed),
    )(*args)


# ------------------------------- 3D PatchGAN discriminator ------------------------------

def _bn_scale_shift(stats, layer, num_groups, rows_per_group):
    """Finalize per-group BatchNorm (training-mode batch stats, biased var) -> affine."""
    C = stats.shape[-1]
    s = stats.reshape(num_groups, -1, 2, C).sum(axis=1)            # (G, 2, C)
    mean = s[:, 0, :] / rows_per_group
    var = jnp.maximum(s[:, 1, :] / rows_per_group - mean * mean, 0.0)
    scale = layer["gamma"][None, :] * jax.lax.rsqrt(var + _BN_EPS)
    shift = layer["beta"][None, :] - mean * scale
    return jnp.stack([scale, shift], axis=1)                       # (G, 2, C)


def nlayer_discriminator_3d(disc_params, x_cl, num_groups):
    """NLayerDiscriminator3D forward; BN+LeakyReLU fused into the next conv's prologue.

    x_cl: (N, T, H, W, C) bf16, N divisible by num_groups (groups = contiguous batch
    chunks).  BatchNorm statistics are per group, so a concatenated real+fake pass is
    equivalent to two separate PyTorch discriminator calls.  Returns the f32 logits
    map (N, To, Ho, Wo, 1).
    """
    N = x_cl.shape[0]
    assert N % num_groups == 0
    h = x_cl
    ab = None
    for layer in disc_params:
        mode = layer["mode"]
        if mode == "final":
            return _conv3d_layer(h, layer, "final", num_groups, ab=ab)
        if mode == "bn":
            y, stats = _conv3d_layer(h, layer, "bn", num_groups, ab=ab)
            Ny, To, Ho, Wo, _ = y.shape
            rows = (Ny // num_groups) * To * Ho * Wo
            ab = _bn_scale_shift(stats, layer, num_groups, rows)
            h = y
        else:                                                   # "plain": bias+lrelu fused
            h = _conv3d_layer(h, layer, "plain", num_groups, ab=ab)
            ab = None
    raise ValueError("discriminator parameter list must end with a 'final' layer")


# ------------------------------- loss reductions (Pallas) -------------------------------

def _absdiff_partial_kernel(x_ref, y_ref, o_ref):
    d = x_ref[...].astype(jnp.float32) - y_ref[...].astype(jnp.float32)
    o_ref[...] = jnp.sum(jnp.abs(d), axis=0, keepdims=True).reshape(o_ref.shape)


def _kl_partial_kernel(m_ref, lv_ref, o_ref):
    m = m_ref[...].astype(jnp.float32)
    lv = lv_ref[...].astype(jnp.float32)
    kl = 0.5 * (m * m + jnp.exp(lv) - 1.0 - lv)
    o_ref[...] = jnp.sum(kl, axis=0, keepdims=True).reshape(o_ref.shape)


def _lane_dense_2d(x):
    total = x.size
    for lanes in (512, 256, 128):
        if total % lanes == 0:
            return x.reshape(total // lanes, lanes)
    return x.reshape(-1, x.shape[-1])


def _partial_reduce(kernel, arrays):
    """Lane-dense tiled reduction emitting per-tile partials (parallel grid)."""
    arrs = [_lane_dense_2d(a) for a in arrays]        # keep source dtype; cast in-kernel
    R, L = arrs[0].shape
    TR = _largest_divisor(R, 1024, multiple_of=8)
    G = R // TR
    partials = pl.pallas_call(
        kernel,
        out_shape=jax.ShapeDtypeStruct((G, 1, L), jnp.float32),
        grid_spec=pltpu.PrefetchScalarGridSpec(
            num_scalar_prefetch=0,
            grid=(G,),
            in_specs=[pl.BlockSpec((TR, L), lambda i: (i, 0))] * len(arrs),
            out_specs=pl.BlockSpec((1, 1, L), lambda i: (i, 0, 0))),
        compiler_params=pltpu.CompilerParams(
            dimension_semantics=("parallel",),
            vmem_limit_bytes=_vmem_limit()),
    )(*arrs)
    return jnp.sum(partials)


# ----------------------------------- loss forward ---------------------------------------

def adopt_weight(weight, global_step, threshold=0, value=0.0):
    if global_step < threshold:
        weight = value
    return weight


def lpips_with_discriminator_3d_forward(
        disc_params, logvar, inputs, reconstructions, post_mean, post_logvar,
        optimizer_idx, global_step, *, kl_weight=1.0, disc_factor=1.0,
        discriminator_weight=1.0, disc_start=0, disc_loss="hinge",
        split="train", weights=None, d_weight=None):
    """LPIPSWithDiscriminator3D.forward.

    inputs / reconstructions: (B, C, T, H, W); post_mean / post_logvar: diagonal-Gaussian
    posterior params.  optimizer_idx / global_step / disc_start are static Python ints.
    """
    assert weights is None        # TODO(synk): per-element `weights` path not implemented
    assert disc_loss in ("hinge", "vanilla")
    f32 = jnp.float32
    B = inputs.shape[0]
    T = inputs.shape[2]
    numel = inputs.size
    frames = B * T                                     # shape[0] of the '(b t) c h w' view

    logvar = jnp.asarray(logvar, f32)
    rec_sum = _partial_reduce(_absdiff_partial_kernel, [inputs, reconstructions])
    rec_loss_mean = rec_sum / numel
    # TODO(synk): LPIPS perceptual term (pretrained VGG16) omitted (perceptual weight 0).
    nll_sum = rec_sum * jnp.exp(-logvar) + logvar * numel
    nll_loss = nll_sum / frames
    weighted_nll_loss = nll_loss                       # weights is None

    kl_sum = _partial_reduce(_kl_partial_kernel, [post_mean, post_logvar])
    kl_loss = kl_sum / B

    if global_step < disc_start:
        loss = weighted_nll_loss + kl_weight * kl_loss
        log = {
            f"{split}/total_loss": loss,
            f"{split}/logvar": logvar,
            f"{split}/kl_loss": kl_loss,
            f"{split}/nll_loss": nll_loss,
            f"{split}/rec_loss": rec_loss_mean,
        }
        return loss, log

    disc_factor_eff = adopt_weight(disc_factor, global_step, threshold=disc_start)

    if optimizer_idx == 0:
        x_cl = jnp.transpose(reconstructions.astype(jnp.bfloat16), (0, 2, 3, 4, 1))
        logits_fake = nlayer_discriminator_3d(disc_params, x_cl, num_groups=1)
        g_loss = -jnp.mean(logits_fake)
        if d_weight is None:
            # TODO(synk): calculate_adaptive_weight needs autograd w.r.t. the decoder's
            #             last layer; use the module's eval fallback d_weight = 0.0.
            d_weight_v = jnp.asarray(0.0, f32)
        else:
            d_weight_v = jnp.asarray(d_weight, f32) * discriminator_weight
        loss = (weighted_nll_loss + kl_weight * kl_loss
                + d_weight_v * disc_factor_eff * g_loss)
        log = {
            f"{split}/total_loss": loss,
            f"{split}/logvar": logvar,
            f"{split}/kl_loss": kl_loss,
            f"{split}/nll_loss": nll_loss,
            f"{split}/rec_loss": rec_loss_mean,
            f"{split}/d_weight": d_weight_v,
            f"{split}/disc_factor": jnp.asarray(disc_factor_eff, f32),
            f"{split}/g_loss": g_loss,
        }
        return loss, log

    if optimizer_idx == 1:
        # One concatenated discriminator pass: group 0 = real, group 1 = fake.  BatchNorm
        # stats stay per group, matching torch's two separate discriminator calls.
        both = jnp.concatenate([inputs, reconstructions], axis=0).astype(jnp.bfloat16)
        x_cl = jnp.transpose(both, (0, 2, 3, 4, 1))
        logits = nlayer_discriminator_3d(disc_params, x_cl, num_groups=2)
        logits_real, logits_fake = logits[:B], logits[B:]
        if disc_loss == "hinge":
            core = 0.5 * (jnp.mean(jax.nn.relu(1.0 - logits_real))
                          + jnp.mean(jax.nn.relu(1.0 + logits_fake)))
        else:  # vanilla
            core = 0.5 * (jnp.mean(jax.nn.softplus(-logits_real))
                          + jnp.mean(jax.nn.softplus(logits_fake)))
        d_loss = disc_factor_eff * core
        log = {
            f"{split}/disc_loss": d_loss,
            f"{split}/logits_real": jnp.mean(logits_real),
            f"{split}/logits_fake": jnp.mean(logits_fake),
        }
        return d_loss, log

    raise ValueError("optimizer_idx must be 0 or 1")


# ----------------------------------- parameter init -------------------------------------

def init_params(key, disc_in_channels=3, ndf=64, logvar_init=0.0):
    """NLayerDiscriminator3D(input_nc=3, ndf=64, n_layers=3) + logvar parameter.

    weights_init: conv weights ~ N(0, 0.02); BN gamma ~ N(1, 0.02), beta = 0.
    BN layers use bias-free convs (use_bias=False because norm_layer is BatchNorm3d).
    Conv weights are stored as (9 taps over ky,kx; K = kt*Cin + ci; Cout) bf16 so every
    tap is one MXU matmul with K = 3*Cin.
    """
    cfg = [
        # (C_in, C_out, (s_t, s_h, s_w), has_bias, has_bn, mode)
        (disc_in_channels, ndf,     (2, 2, 2), True,  False, "plain"),
        (ndf,              ndf * 2, (2, 2, 2), False, True,  "bn"),
        (ndf * 2,          ndf * 4, (1, 2, 2), False, True,  "bn"),
        (ndf * 4,          ndf * 8, (1, 1, 1), False, True,  "bn"),
        (ndf * 8,          1,       (1, 1, 1), True,  False, "final"),
    ]
    params = []
    for (ic, oc, stride, has_bias, has_bn, mode) in cfg:
        key, kw_, kg_ = jax.random.split(key, 3)
        w = 0.02 * jax.random.normal(kw_, (oc, ic, 3, 3, 3), jnp.float32)
        # (Cout, Cin, kt, ky, kx) -> (ky, kx, kt, Cin, Cout) -> (9, 3*Cin, Cout)
        wmat = jnp.transpose(w, (3, 4, 2, 1, 0)).reshape(9, 3 * ic, oc)
        layer = {
            "wmat": wmat.astype(jnp.bfloat16),
            "bias2d": jnp.zeros((1, oc), jnp.float32),   # zero when has_bias=False
            "stride": stride,
            "mode": mode,
        }
        if has_bn:
            layer["gamma"] = 1.0 + 0.02 * jax.random.normal(kg_, (oc,), jnp.float32)
            layer["beta"] = jnp.zeros((oc,), jnp.float32)
        params.append(layer)
    return params, jnp.asarray(logvar_init, jnp.float32)


# ---------------------------------------- main -------------------------------------------

if __name__ == "__main__":
    key = jax.random.PRNGKey(0)
    k_p, k_in, k_rec, k_m, k_lv = jax.random.split(key, 5)

    disc_params, logvar = init_params(k_p)

    # (B, C, T, H, W) video batch; latent posterior (B, Cz, Tz, Hz, Wz)
    inputs = jax.random.normal(k_in, (2, 3, 8, 32, 32), jnp.float32)
    reconstructions = jax.random.normal(k_rec, (2, 3, 8, 32, 32), jnp.float32)
    post_mean = jax.random.normal(k_m, (2, 4, 4, 8, 8), jnp.float32)
    post_logvar = 0.1 * jax.random.normal(k_lv, (2, 4, 4, 8, 8), jnp.float32)

    # generator update path
    loss_g, log_g = lpips_with_discriminator_3d_forward(
        disc_params, logvar, inputs, reconstructions, post_mean, post_logvar,
        optimizer_idx=0, global_step=1, disc_start=0)

    # discriminator update path (single concatenated real+fake discriminator pass)
    loss_d, log_d = lpips_with_discriminator_3d_forward(
        disc_params, logvar, inputs, reconstructions, post_mean, post_logvar,
        optimizer_idx=1, global_step=1, disc_start=0)

    jax.block_until_ready((loss_g, log_g, loss_d, log_d))
    print("KERNEL_OK")
</pallas_src>

<mosaic_0001>
module attributes {stable_mosaic.version = 11 : i64} {
  func.func @_absdiff_partial_kernel(%arg0: i32, %arg1: memref<96x512xf32, #tpu.memory_space<vmem>>, %arg2: memref<96x512xf32, #tpu.memory_space<vmem>>, %arg3: memref<1x1x512xf32, #tpu.memory_space<vmem>>) attributes {dimension_semantics = [#tpu.dimension_semantics<parallel>], iteration_bounds = array<i64: 1>, scalar_prefetch = 0 : i64, scratch_operands = 0 : i64, tpu.core_type = #tpu.core_type<tc>, window_params = [{transform_indices = @transform_0, window_bounds = array<i64: 96, 512>}, {transform_indices = @transform_1, window_bounds = array<i64: 96, 512>}, {transform_indices = @transform_2, window_bounds = array<i64: 1, 1, 512>}]} {
    %c0 = arith.constant 0 : index
    %c0_0 = arith.constant 0 : index
    %0 = vector.load %arg1[%c0, %c0_0] : memref<96x512xf32, #tpu.memory_space<vmem>>, vector<96x512xf32>
    %c0_1 = arith.constant 0 : index
    %c0_2 = arith.constant 0 : index
    %1 = vector.load %arg2[%c0_1, %c0_2] : memref<96x512xf32, #tpu.memory_space<vmem>>, vector<96x512xf32>
    %2 = arith.subf %0, %1 : vector<96x512xf32>
    %3 = math.absf %2 : vector<96x512xf32>
    %cst = arith.constant dense<0.000000e+00> : vector<512xf32>
    %4 = vector.multi_reduction <add>, %3, %cst [0] : vector<96x512xf32> to vector<512xf32>
    %5 = vector.shape_cast %4 : vector<512xf32> to vector<1x512xf32>
    %6 = vector.shape_cast %5 : vector<1x512xf32> to vector<1x1x512xf32>
    %c0_3 = arith.constant 0 : index
    %c0_4 = arith.constant 0 : index
    %c0_5 = arith.constant 0 : index
    %7 = vector.load %arg3[%c0_3, %c0_4, %c0_5] : memref<1x1x512xf32, #tpu.memory_space<vmem>>, vector<1x1x512xf32>
    tpu.vector_store %arg3[%c0_3, %c0_4, %c0_5], %6 {strides = array<i32>} : memref<1x1x512xf32, #tpu.memory_space<vmem>>, vector<1x1x512xf32>,
    return
  }
  func.func @transform_0(%arg0: i32) -> (i32, i32) {
    %c0_i32 = arith.constant 0 : i32
    %c0_i32_0 = arith.constant 0 : i32
    return %arg0, %c0_i32 : i32, i32
  }
  func.func @transform_1(%arg0: i32) -> (i32, i32) {
    %c0_i32 = arith.constant 0 : i32
    %c0_i32_0 = arith.constant 0 : i32
    return %arg0, %c0_i32 : i32, i32
  }
  func.func @transform_2(%arg0: i32) -> (i32, i32, i32) {
    %c0_i32 = arith.constant 0 : i32
    %c0_i32_0 = arith.constant 0 : i32
    %c0_i32_1 = arith.constant 0 : i32
    return %arg0, %c0_i32, %c0_i32_0 : i32, i32, i32
  }
}

</mosaic_0001>

<llo_original>
// kernel: tpu_custom_call.1
$region0: #{tpu_custom_call.1}
  #allocation0 [shape = 'u32[]', space=smem, size = 0x4, offset = 0x4, fixed_abs, tag = 'smem constant byte address 0x4 - core index']
  #allocation1 [shape = 'u32[144,128]{1,0:T(1,128)}', space=vmem, size = 0x12000, scoped, tag = 'internal scratch']
  %s0 = inlined_call_operand.hbm [shape: f32[96,512], index: 0, kind: input, shape index: {}]
  %s1 = inlined_call_operand.hbm [shape: f32[96,512], index: 1, kind: input, shape index: {}]
  %s2 = inlined_call_operand.hbm [shape: f32[1,1,512], index: 2, kind: output, shape index: {}]
  %s3 = sld [smem:[#allocation0]]
  $region26: #{tpu_custom_call.1} parent=0
    _
  %s5 = ssub.s32 1, %s3
  %s6 = scalar_select 0, %s5, %s3
  $region1: #{tpu_custom_call.1} parent=0
    #allocation2 [shape = 'u8[196608]{0}', space=vmem, size = 0x30000, scoped, tag = 'input window, operand 0, single buffered']
    #allocation3 [shape = 's32[1]{0}', space=sflag, size = 0x4, scoped, tag = 'scoped memory for tpu_custom_call.1']
    #allocation4 [shape = 's32[1]{0}', space=sflag, size = 0x4, scoped, tag = 'scoped memory for tpu_custom_call.1']
    #allocation5 [shape = 'u8[196608]{0}', space=vmem, size = 0x30000, scoped, tag = 'input window, operand 1, single buffered']
    #allocation6 [shape = 's32[1]{0}', space=sflag, size = 0x4, scoped, tag = 'scoped memory for tpu_custom_call.1']
    #allocation7 [shape = 'u8[2048]{0}', space=vmem, size = 0x800, scoped, tag = 'output window, operand 0, single buffered']
    %7 = vsyncpa [#allocation3], 0
    %8 = vsyncpa [#allocation6], 0
    %9 = vsyncpa [#allocation4], 0
    // Predicated region
    $region2: #{tpu_custom_call.1} parent=1 // pred_check
      _
    $region3: #{tpu_custom_call.1} parent=1 // pred_check_branch
      %11 = sbr.rel (0) target = $region5
    $region4: #{tpu_custom_call.1} parent=1 // pred_region
      %s13 = ssub.s32 6144, 6144
      %14 = vsyncadd [#allocation3], %s13
      %s15 = sshll.u32 [#allocation2], 4
      %s16 = int_to_ptr.vmem [resolvable:$true] %s15
      %21 = dma.hbm_to_vmem [thread:$0]  %s0, 6144, %s16, [#allocation3], 512, 512, 32
    $region5: #{tpu_custom_call.1} parent=1 // pred_fallthru
      _
    // Predicated region
    $region6: #{tpu_custom_call.1} parent=1 // pred_check
      _
    $region7: #{tpu_custom_call.1} parent=1 // pred_check_branch
      %23 = sbr.rel (0) target = $region9
    $region8: #{tpu_custom_call.1} parent=1 // pred_region
      %s25 = ssub.s32 6144, 6144
      %26 = vsyncadd [#allocation6], %s25
      %s27 = sshll.u32 [#allocation5], 4
      %s28 = int_to_ptr.vmem [resolvable:$true] %s27
      %33 = dma.hbm_to_vmem [thread:$0]  %s1, 6144, %s28, [#allocation6], 512, 512, 32
    $region9: #{tpu_custom_call.1} parent=1 // pred_fallthru
      _
    // Predicated region
    $region10: #{tpu_custom_call.1} parent=1 // pred_check
      _
    $region11: #{tpu_custom_call.1} parent=1 // pred_check_branch
      %35 = sbr.rel (0) target = $region13
    $region12: #{tpu_custom_call.1} parent=1 // pred_region
      %36 = dma.done [#allocation3], 6144
    $region13: #{tpu_custom_call.1} parent=1 // pred_fallthru
      _
    // Predicated region
    $region14: #{tpu_custom_call.1} parent=1 // pred_check
      _
    $region15: #{tpu_custom_call.1} parent=1 // pred_check_branch
      %38 = sbr.rel (0) target = $region17
    $region16: #{tpu_custom_call.1} parent=1 // pred_region
      %39 = dma.done [#allocation6], 6144
    $region17: #{tpu_custom_call.1} parent=1 // pred_fallthru
      _
    %v40 = vld [vmem:[#allocation2] sm:$0xff]
    %v41 = vld [vmem:[#allocation2 + $0x8] sm:$0xff]
    %v42 = vld [vmem:[#allocation2 + $0x10] sm:$0xff]
    %v43 = vld [vmem:[#allocation2 + $0x18] sm:$0xff]
    %v44 = vld [vmem:[#allocation2 + $0x20] sm:$0xff]
    %v45 = vld [vmem:[#allocation2 + $0x28] sm:$0xff]
    %v46 = vld [vmem:[#allocation2 + $0x30] sm:$0xff]
    %v47 = vld [vmem:[#allocation2 + $0x38] sm:$0xff]
    %v48 = vld [vmem:[#allocation2 + $0x40] sm:$0xff]
    %v49 = vld [vmem:[#allocation2 + $0x48] sm:$0xff]
    %v50 = vld [vmem:[#allocation2 + $0x50] sm:$0xff]
    %v51 = vld [vmem:[#allocation2 + $0x58] sm:$0xff]
    %v52 = vld [vmem:[#allocation2 + $0x60] sm:$0xff]
    %v53 = vld [vmem:[#allocation2 + $0x68] sm:$0xff]
    %v54 = vld [vmem:[#allocation2 + $0x70] sm:$0xff]
    %v55 = vld [vmem:[#allocation2 + $0x78] sm:$0xff]
    %v56 = vld [vmem:[#allocation2 + $0x80] sm:$0xff]
    %v57 = vld [vmem:[#allocation2 + $0x88] sm:$0xff]
    %v58 = vld [vmem:[#allocation2 + $0x90] sm:$0xff]
    %v59 = vld [vmem:[#allocation2 + $0x98] sm:$0xff]
    %v60 = vld [vmem:[#allocation2 + $0xa0] sm:$0xff]
    %v61 = vld [vmem:[#allocation2 + $0xa8] sm:$0xff]
    %v62 = vld [vmem:[#allocation2 + $0xb0] sm:$0xff]
    %v63 = vld [vmem:[#allocation2 + $0xb8] sm:$0xff]
    %v64 = vld [vmem:[#allocation2 + $0xc0] sm:$0xff]
    %v65 = vld [vmem:[#allocation2 + $0xc8] sm:$0xff]
    %v66 = vld [vmem:[#allocation2 + $0xd0] sm:$0xff]
    %v67 = vld [vmem:[#allocation2 + $0xd8] sm:$0xff]
    %v68 = vld [vmem:[#allocation2 + $0xe0] sm:$0xff]
    %v69 = vld [vmem:[#allocation2 + $0xe8] sm:$0xff]
    %v70 = vld [vmem:[#allocation2 + $0xf0] sm:$0xff]
    %v71 = vld [vmem:[#allocation2 + $0xf8] sm:$0xff]
    %v72 = vld [vmem:[#allocation2 + $0x100] sm:$0xff]
    %v73 = vld [vmem:[#allocation2 + $0x108] sm:$0xff]
    %v74 = vld [vmem:[#allocation2 + $0x110] sm:$0xff]
    %v75 = vld [vmem:[#allocation2 + $0x118] sm:$0xff]
    %v76 = vld [vmem:[#allocation2 + $0x120] sm:$0xff]
    %v77 = vld [vmem:[#allocation2 + $0x128] sm:$0xff]
    %v78 = vld [vmem:[#allocation2 + $0x130] sm:$0xff]
    %v79 = vld [vmem:[#allocation2 + $0x138] sm:$0xff]
    %v80 = vld [vmem:[#allocation2 + $0x140] sm:$0xff]
    %v81 = vld [vmem:[#allocation2 + $0x148] sm:$0xff]
    %v82 = vld [vmem:[#allocation2 + $0x150] sm:$0xff]
    %v83 = vld [vmem:[#allocation2 + $0x158] sm:$0xff]
    %v84 = vld [vmem:[#allocation2 + $0x160] sm:$0xff]
    %v85 = vld [vmem:[#allocation2 + $0x168] sm:$0xff]
    %v86 = vld [vmem:[#allocation2 + $0x170] sm:$0xff]
    %v87 = vld [vmem:[#allocation2 + $0x178] sm:$0xff]
    %v88 = vld [vmem:[#allocation5] sm:$0xff]
    %v89 = vld [vmem:[#allocation5 + $0x8] sm:$0xff]
    %v90 = vld [vmem:[#allocation5 + $0x10] sm:$0xff]
    %v91 = vld [vmem:[#allocation5 + $0x18] sm:$0xff]
    %v92 = vld [vmem:[#allocation5 + $0x20] sm:$0xff]
    %v93 = vld [vmem:[#allocation5 + $0x28] sm:$0xff]
    %v94 = vld [vmem:[#allocation5 + $0x30] sm:$0xff]
    %v95 = vld [vmem:[#allocation5 + $0x38] sm:$0xff]
    %v96 = vld [vmem:[#allocation5 + $0x40] sm:$0xff]
    %v97 = vld [vmem:[#allocation5 + $0x48] sm:$0xff]
    %v98 = vld [vmem:[#allocation5 + $0x50] sm:$0xff]
    %v99 = vld [vmem:[#allocation5 + $0x58] sm:$0xff]
    %v100 = vld [vmem:[#allocation5 + $0x60] sm:$0xff]
    %v101 = vld [vmem:[#allocation5 + $0x68] sm:$0xff]
    %v102 = vld [vmem:[#allocation5 + $0x70] sm:$0xff]
    %v103 = vld [vmem:[#allocation5 + $0x78] sm:$0xff]
    %v104 = vld [vmem:[#allocation5 + $0x80] sm:$0xff]
    %v105 = vld [vmem:[#allocation5 + $0x88] sm:$0xff]
    %v106 = vld [vmem:[#allocation5 + $0x90] sm:$0xff]
    %v107 = vld [vmem:[#allocation5 + $0x98] sm:$0xff]
    %v108 = vld [vmem:[#allocation5 + $0xa0] sm:$0xff]
    %v109 = vld [vmem:[#allocation5 + $0xa8] sm:$0xff]
    %v110 = vld [vmem:[#allocation5 + $0xb0] sm:$0xff]
    %v111 = vld [vmem:[#allocation5 + $0xb8] sm:$0xff]
    %v112 = vld [vmem:[#allocation5 + $0xc0] sm:$0xff]
    %v113 = vld [vmem:[#allocation5 + $0xc8] sm:$0xff]
    %v114 = vld [vmem:[#allocation5 + $0xd0] sm:$0xff]
    %v115 = vld [vmem:[#allocation5 + $0xd8] sm:$0xff]
    %v116 = vld [vmem:[#allocation5 + $0xe0] sm:$0xff]
    %v117 = vld [vmem:[#allocation5 + $0xe8] sm:$0xff]
    %v118 = vld [vmem:[#allocation5 + $0xf0] sm:$0xff]
    %v119 = vld [vmem:[#allocation5 + $0xf8] sm:$0xff]
    %v120 = vld [vmem:[#allocation5 + $0x100] sm:$0xff]
    %v121 = vld [vmem:[#allocation5 + $0x108] sm:$0xff]
    %v122 = vld [vmem:[#allocation5 + $0x110] sm:$0xff]
    %v123 = vld [vmem:[#allocation5 + $0x118] sm:$0xff]
    %v124 = vld [vmem:[#allocation5 + $0x120] sm:$0xff]
    %v125 = vld [vmem:[#allocation5 + $0x128] sm:$0xff]
    %v126 = vld [vmem:[#allocation5 + $0x130] sm:$0xff]
    %v127 = vld [vmem:[#allocation5 + $0x138] sm:$0xff]
    %v128 = vld [vmem:[#allocation5 + $0x140] sm:$0xff]
    %v129 = vld [vmem:[#allocation5 + $0x148] sm:$0xff]
    %v130 = vld [vmem:[#allocation5 + $0x150] sm:$0xff]
    %v131 = vld [vmem:[#allocation5 + $0x158] sm:$0xff]
    %v132 = vld [vmem:[#allocation5 + $0x160] sm:$0xff]
    %v133 = vld [vmem:[#allocation5 + $0x168] sm:$0xff]
    %v134 = vld [vmem:[#allocation5 + $0x170] sm:$0xff]
    %v135 = vld [vmem:[#allocation5 + $0x178] sm:$0xff]
    %v136 = vsub.f32 %v40, %v88
    %v137 = vsub.f32 %v41, %v89
    %v138 = vsub.f32 %v42, %v90
    %v139 = vsub.f32 %v43, %v91
    %v140 = vsub.f32 %v44, %v92
    %v141 = vsub.f32 %v45, %v93
    %v142 = vsub.f32 %v46, %v94
    %v143 = vsub.f32 %v47, %v95
    %v144 = vsub.f32 %v48, %v96
    %v145 = vsub.f32 %v49, %v97
    %v146 = vsub.f32 %v50, %v98
    %v147 = vsub.f32 %v51, %v99
    %v148 = vsub.f32 %v52, %v100
    %v149 = vsub.f32 %v53, %v101
    %v150 = vsub.f32 %v54, %v102
    %v151 = vsub.f32 %v55, %v103
    %v152 = vsub.f32 %v56, %v104
    %v153 = vsub.f32 %v57, %v105
    %v154 = vsub.f32 %v58, %v106
    %v155 = vsub.f32 %v59, %v107
    %v156 = vsub.f32 %v60, %v108
    %v157 = vsub.f32 %v61, %v109
    %v158 = vsub.f32 %v62, %v110
    %v159 = vsub.f32 %v63, %v111
    %v160 = vsub.f32 %v64, %v112
    %v161 = vsub.f32 %v65, %v113
    %v162 = vsub.f32 %v66, %v114
    %v163 = vsub.f32 %v67, %v115
    %v164 = vsub.f32 %v68, %v116
    %v165 = vsub.f32 %v69, %v117
    %v166 = vsub.f32 %v70, %v118
    %v167 = vsub.f32 %v71, %v119
    %v168 = vsub.f32 %v72, %v120
    %v169 = vsub.f32 %v73, %v121
    %v170 = vsub.f32 %v74, %v122
    %v171 = vsub.f32 %v75, %v123
    %v172 = vsub.f32 %v76, %v124
    %v173 = vsub.f32 %v77, %v125
    %v174 = vsub.f32 %v78, %v126
    %v175 = vsub.f32 %v79, %v127
    %v176 = vsub.f32 %v80, %v128
    %v177 = vsub.f32 %v81, %v129
    %v178 = vsub.f32 %v82, %v130
    %v179 = vsub.f32 %v83, %v131
    %v180 = vsub.f32 %v84, %v132
    %v181 = vsub.f32 %v85, %v133
    %v182 = vsub.f32 %v86, %v134
    %v183 = vsub.f32 %v87, %v135
    %v184 = vand.u32 2147483647, %v136
    %v185 = vand.u32 2147483647, %v137
    %v186 = vand.u32 2147483647, %v138
    %v187 = vand.u32 2147483647, %v139
    %v188 = vand.u32 2147483647, %v140
    %v189 = vand.u32 2147483647, %v141
    %v190 = vand.u32 2147483647, %v142
    %v191 = vand.u32 2147483647, %v143
    %v192 = vand.u32 2147483647, %v144
    %v193 = vand.u32 2147483647, %v145
    %v194 = vand.u32 2147483647, %v146
    %v195 = vand.u32 2147483647, %v147
    %v196 = vand.u32 2147483647, %v148
    %v197 = vand.u32 2147483647, %v149
    %v198 = vand.u32 2147483647, %v150
    %v199 = vand.u32 2147483647, %v151
    %v200 = vand.u32 2147483647, %v152
    %v201 = vand.u32 2147483647, %v153
    %v202 = vand.u32 2147483647, %v154
    %v203 = vand.u32 2147483647, %v155
    %v204 = vand.u32 2147483647, %v156
    %v205 = vand.u32 2147483647, %v157
    %v206 = vand.u32 2147483647, %v158
    %v207 = vand.u32 2147483647, %v159
    %v208 = vand.u32 2147483647, %v160
    %v209 = vand.u32 2147483647, %v161
    %v210 = vand.u32 2147483647, %v162
    %v211 = vand.u32 2147483647, %v163
    %v212 = vand.u32 2147483647, %v164
    %v213 = vand.u32 2147483647, %v165
    %v214 = vand.u32 2147483647, %v166
    %v215 = vand.u32 2147483647, %v167
    %v216 = vand.u32 2147483647, %v168
    %v217 = vand.u32 2147483647, %v169
    %v218 = vand.u32 2147483647, %v170
    %v219 = vand.u32 2147483647, %v171
    %v220 = vand.u32 2147483647, %v172
    %v221 = vand.u32 2147483647, %v173
    %v222 = vand.u32 2147483647, %v174
    %v223 = vand.u32 2147483647, %v175
    %v224 = vand.u32 2147483647, %v176
    %v225 = vand.u32 2147483647, %v177
    %v226 = vand.u32 2147483647, %v178
    %v227 = vand.u32 2147483647, %v179
    %v228 = vand.u32 2147483647, %v180
    %v229 = vand.u32 2147483647, %v181
    %v230 = vand.u32 2147483647, %v182
    %v231 = vand.u32 2147483647, %v183
    %v232 = vadd.f32 %v184, %v188
    %v233 = vadd.f32 %v232, %v192
    %v234 = vadd.f32 %v233, %v196
    %v235 = vadd.f32 %v234, %v200
    %v236 = vadd.f32 %v235, %v204
    %v237 = vadd.f32 %v236, %v208
    %v238 = vadd.f32 %v237, %v212
    %v239 = vadd.f32 %v238, %v216
    %v240 = vadd.f32 %v239, %v220
    %v241 = vadd.f32 %v240, %v224
    %v242 = vadd.f32 %v241, %v228
    %v243 = vrot.slane %v242, 4
    %v244 = vadd.f32 %v242, %v243
    %v245 = vrot.slane %v244, 2
    %v246 = vadd.f32 %v244, %v245
    %v247 = vrot.slane %v246, 1
    %v248 = vadd.f32 %v246, %v247
    %v249 = vadd.f32 %v185, %v189
    %v250 = vadd.f32 %v249, %v193
    %v251 = vadd.f32 %v250, %v197
    %v252 = vadd.f32 %v251, %v201
    %v253 = vadd.f32 %v252, %v205
    %v254 = vadd.f32 %v253, %v209
    %v255 = vadd.f32 %v254, %v213
    %v256 = vadd.f32 %v255, %v217
    %v257 = vadd.f32 %v256, %v221
    %v258 = vadd.f32 %v257, %v225
    %v259 = vadd.f32 %v258, %v229
    %v260 = vrot.slane %v259, 4
    %v261 = vadd.f32 %v259, %v260
    %v262 = vrot.slane %v261, 2
    %v263 = vadd.f32 %v261, %v262
    %v264 = vrot.slane %v263, 1
    %v265 = vadd.f32 %v263, %v264
    %v266 = vadd.f32 %v186, %v190
    %v267 = vadd.f32 %v266, %v194
    %v268 = vadd.f32 %v267, %v198
    %v269 = vadd.f32 %v268, %v202
    %v270 = vadd.f32 %v269, %v206
    %v271 = vadd.f32 %v270, %v210
    %v272 = vadd.f32 %v271, %v214
    %v273 = vadd.f32 %v272, %v218
    %v274 = vadd.f32 %v273, %v222
    %v275 = vadd.f32 %v274, %v226
    %v276 = vadd.f32 %v275, %v230
    %v277 = vrot.slane %v276, 4
    %v278 = vadd.f32 %v276, %v277
    %v279 = vrot.slane %v278, 2
    %v280 = vadd.f32 %v278, %v279
    %v281 = vrot.slane %v280, 1
    %v282 = vadd.f32 %v280, %v281
    %v283 = vadd.f32 %v187, %v191
    %v284 = vadd.f32 %v283, %v195
    %v285 = vadd.f32 %v284, %v199
    %v286 = vadd.f32 %v285, %v203
    %v287 = vadd.f32 %v286, %v207
    %v288 = vadd.f32 %v287, %v211
    %v289 = vadd.f32 %v288, %v215
    %v290 = vadd.f32 %v289, %v219
    %v291 = vadd.f32 %v290, %v223
    %v292 = vadd.f32 %v291, %v227
    %v293 = vadd.f32 %v292, %v231
    %v294 = vrot.slane %v293, 4
    %v295 = vadd.f32 %v293, %v294
    %v296 = vrot.slane %v295, 2
    %v297 = vadd.f32 %v295, %v296
    %v298 = vrot.slane %v297, 1
    %v299 = vadd.f32 %v297, %v298
    %v304 = vcombine.low %v248, %v265
    %v305 = vcombine.low %v282, %v299
    %v307 = vunpack.c.l.s4 1966171168
    %v308 = vunpack.c.0.s8 %v307
    %v309 = vlaneseq
    %v310 = vshrl.u32 %v309, 7
    %v311 = vsub.s32 %v308, %v310
    %v312 = vrot.slane %v304, %v311
    %v314 = vunpack.c.l.s4 1966171168
    %v315 = vunpack.c.0.s8 %v314
    %v316 = vlaneseq
    %v317 = vshrl.u32 %v316, 7
    %v318 = vsub.s32 %v315, %v317
    %v319 = vrot.slane %v305, %v318
    %v320 = vcombine.low %v312, %v319
    %v322 = vunpack.c.l.s4 1966171168
    %v323 = vunpack.c.0.s8 %v322
    %v324 = vlaneseq
    %v325 = vshrl.u32 %v324, 7
    %v326 = vsub.s32 %v323, %v325
    %v327 = vrot.slane %v320, %v326
    %v329 = vlaneseq
    %vm330 = vcmp.ge.s32.totalorder %v329, 0
    %vm331 = vcmp.lt.s32.totalorder %v329, 512
    %vm332 = vmand %vm330, %vm331
    %333 = vst.msk [vmem:[#allocation7] sm:$0xf] %vm332, %v327
    // Predicated region
    $region18: #{tpu_custom_call.1} parent=1 // pred_check
      _
    $region19: #{tpu_custom_call.1} parent=1 // pred_check_branch
      %335 = sbr.rel (0) target = $region21
    $region20: #{tpu_custom_call.1} parent=1 // pred_region
      %s337 = ssub.s32 64, 64
      %338 = vsyncadd [#allocation4], %s337
      %s340 = sshll.u32 [#allocation7], 4
      %s341 = int_to_ptr.vmem [resolvable:$true] %s340
      %343 = dma.vmem_to_hbm [thread:$0]  %s341, 64, %s2, [#allocation4]
    $region21: #{tpu_custom_call.1} parent=1 // pred_fallthru
      _
    // Predicated region
    $region22: #{tpu_custom_call.1} parent=1 // pred_check
      _
    $region23: #{tpu_custom_call.1} parent=1 // pred_check_branch
      %345 = sbr.rel (0) target = $region25
    $region24: #{tpu_custom_call.1} parent=1 // pred_region
      %346 = dma.done [#allocation4], 64
    $region25: #{tpu_custom_call.1} parent=1 // pred_fallthru
      _
    %347 = vsyncpa [#allocation3], 1
    %348 = vsyncpa [#allocation6], 1
    %349 = vsyncpa [#allocation4], 1

</llo_original>
